<compile_context>
chip_gen: v7x
topology: tpu7x:2x2x1
jax: 0.10.0
libtpu: 0.0.40
codegen_flags: <defaults>
</compile_context>

<pallas_src>
import jax
import jax.numpy as jnp
from jax.experimental import pallas as pl
from jax.experimental.pallas import tpu as pltpu

SLOPE = 0.0001  # leaky_relu negative slope used by the module (not torch default)
Z_DIM = 16      # forced by z.reshape(-1, 16) in the module
Y_DIM = 2       # forced by y.reshape(-1, 2)  in the module

_SUB = 8                      # f32 sublane count
_VMEM_TILE_BUDGET = 24 << 20  # keep double-buffered tiles under v7x's 32 MiB scoped default


def _leaky_relu(x, slope):
    return jnp.where(x > 0, x, slope * x)


def _sigmoid_stable(x):
    # exactly sigmoid(x), stable for large |x|, uses the EUP tanh unit
    return 0.5 * jnp.tanh(0.5 * x) + 0.5


def decoder_kernel(z_ref, y_ref, w4z_ref, w4y_ref, b4_ref,
                   w5_ref, b5_ref, w6_ref, b6_ref, out_ref):
    # fc4: z-half on the MXU; y-half (K=2) as two VPU broadcast-FMAs
    h = jnp.dot(z_ref[...], w4z_ref[...], preferred_element_type=jnp.float32)
    yv = y_ref[...].astype(jnp.float32)
    w4y = w4y_ref[...].astype(jnp.float32)
    h = h + yv[:, 0:1] * w4y[0:1, :] + yv[:, 1:2] * w4y[1:2, :]
    h = _leaky_relu(h + b4_ref[...], SLOPE)
    # fc5
    h = jnp.dot(h.astype(w5_ref.dtype), w5_ref[...],
                preferred_element_type=jnp.float32)
    h = _leaky_relu(h + b5_ref[...], SLOPE)
    # fc6 + sigmoid
    o = jnp.dot(h.astype(w6_ref.dtype), w6_ref[...],
                preferred_element_type=jnp.float32)
    o = o + b6_ref[...]
    out_ref[...] = _sigmoid_stable(o).astype(out_ref.dtype)


def decoder_forward(z, y, params, *, batch_tile=8192, out_dtype=jnp.float32):
    """z: [..., 16-flattenable], y: [..., 2-flattenable]. Returns [B, x_dim]."""
    w4z, w4y, b4, w5, b5, w6, b6 = params
    z = z.reshape(-1, Z_DIM)
    y = y.reshape(-1, Y_DIM)
    B = z.shape[0]
    h1 = w5.shape[0]
    h2 = w6.shape[0]
    x_dim = w6.shape[1]

    # ---- batch tile selection -------------------------------------------
    out_row_bytes = x_dim * jnp.dtype(out_dtype).itemsize
    in_row_bytes = (Z_DIM + Y_DIM) * z.dtype.itemsize
    # double-buffered in+out tile bytes must stay under the scoped-VMEM budget
    tb_cap = _VMEM_TILE_BUDGET // (2 * (in_row_bytes + out_row_bytes))
    tb_cap = max(_SUB, (tb_cap // _SUB) * _SUB)

    if B >= batch_tile:
        tb = min(batch_tile, tb_cap)
    else:
        tb = min(B + _SUB - 1, tb_cap)
    tb = max(_SUB, (tb // _SUB) * _SUB)          # guard: never 0, sublane aligned
    n_tiles = pl.cdiv(B, tb)

    # v7x megacore: guarantee >= 2 tiles when the batch is big enough to
    # amortize the extra grid step (no effect on v5e/v6e: 1 TC/chip).
    if n_tiles == 1 and B >= 256:
        tb = max(_SUB, ((pl.cdiv(B, 2) + _SUB - 1) // _SUB) * _SUB)
        n_tiles = pl.cdiv(B, tb)

    b_pad = n_tiles * tb
    if b_pad != B:
        z = jnp.pad(z, ((0, b_pad - B), (0, 0)))
        y = jnp.pad(y, ((0, b_pad - B), (0, 0)))

    batch_spec = lambda cols: pl.BlockSpec((tb, cols), lambda i: (i, 0))
    const_spec = lambda arr: pl.BlockSpec(arr.shape, lambda i: (0, 0))

    weight_bytes = sum(int(a.size) * a.dtype.itemsize
                       for a in (w4z, w4y, b4, w5, b5, w6, b6))
    cost = pl.CostEstimate(
        flops=2 * b_pad * ((Z_DIM + Y_DIM) * h1 + h1 * h2 + h2 * x_dim),
        transcendentals=b_pad * x_dim,
        bytes_accessed=b_pad * (in_row_bytes + out_row_bytes) + weight_bytes,
    )

    out = pl.pallas_call(
        decoder_kernel,
        out_shape=jax.ShapeDtypeStruct((b_pad, x_dim), out_dtype),
        grid=(n_tiles,),
        in_specs=[
            batch_spec(Z_DIM), batch_spec(Y_DIM),
            const_spec(w4z), const_spec(w4y), const_spec(b4),
            const_spec(w5), const_spec(b5),
            const_spec(w6), const_spec(b6),
        ],
        out_specs=pl.BlockSpec((tb, x_dim), lambda i: (i, 0)),
        compiler_params=pltpu.CompilerParams(
            dimension_semantics=("parallel",)),
        cost_estimate=cost,
    )(z, y, w4z, w4y, b4, w5, b5, w6, b6)

    if b_pad != B:
        out = out[:B]          # contiguous prefix slice (cheap); no feature slice
    return out


def init_params(key, z_dim, y_dim, h1, h2, x_dim):
    """PyTorch-style init; weights pre-transposed to (in, out); biases (1, out).
    fc4's weight is split into a z-half (z_dim, h1) and a y-half (y_dim, h1)."""
    ks = jax.random.split(key, 6)

    def lin(kw, kb, fan_in, fan_out):
        bound = 1.0 / jnp.sqrt(fan_in)
        w = jax.random.uniform(kw, (fan_in, fan_out), jnp.float32, -bound, bound)
        b = jax.random.uniform(kb, (1, fan_out), jnp.float32, -bound, bound)
        return w, b

    w4, b4 = lin(ks[0], ks[1], z_dim + y_dim, h1)
    w5, b5 = lin(ks[2], ks[3], h1, h2)
    w6, b6 = lin(ks[4], ks[5], h2, x_dim)
    w4z, w4y = w4[:z_dim], w4[z_dim:]
    return (w4z, w4y, b4, w5, b5, w6, b6)


def reference_forward(z, y, params):
    w4z, w4y, b4, w5, b5, w6, b6 = params
    z = z.reshape(-1, Z_DIM).astype(jnp.float32)
    y = y.reshape(-1, Y_DIM).astype(jnp.float32)
    h = _leaky_relu(z @ w4z + y @ w4y + b4, SLOPE)   # == leaky_relu(cat(z,y) @ w4 + b4)
    h = _leaky_relu(h @ w5 + b5, SLOPE)
    return jax.nn.sigmoid(h @ w6 + b6)


if __name__ == "__main__":
    # small shapes consistent with the module: z_dim=16, y_dim=2 (forced by reshape)
    z_dim, y_dim = Z_DIM, Y_DIM
    h_dim_deco_1, h_dim_deco_2 = 32, 32
    x_dim = 64          # e.g. an 8x8 reconstruction (not 128-aligned -> exercises
                        # the full-array-dim output block path)

    key = jax.random.PRNGKey(0)
    kz, ky, kp = jax.random.split(key, 3)
    params = init_params(kp, z_dim, y_dim, h_dim_deco_1, h_dim_deco_2, x_dim)

    # 1) small batch: single tile, no wrapper pad/slice needed
    batch = 8
    z = jax.random.normal(kz, (batch, z_dim), jnp.float32)
    y = jax.random.normal(ky, (batch, y_dim), jnp.float32)
    out = jax.block_until_ready(decoder_forward(z, y, params))
    ref = reference_forward(z, y, params)
    assert out.shape == (batch, x_dim)
    assert jnp.allclose(out, ref, atol=1e-5, rtol=1e-5)

    # 2) larger batch with a small tile: exercises the multi-tile pipelined grid
    #    plus the ragged-last-tile pad/prefix-slice path
    batch2 = 200
    z2 = jax.random.normal(jax.random.fold_in(kz, 1), (batch2, z_dim), jnp.float32)
    y2 = jax.random.normal(jax.random.fold_in(ky, 1), (batch2, y_dim), jnp.float32)
    out2 = jax.block_until_ready(decoder_forward(z2, y2, params, batch_tile=64))
    ref2 = reference_forward(z2, y2, params)
    assert out2.shape == (batch2, x_dim)
    assert jnp.allclose(out2, ref2, atol=1e-5, rtol=1e-5)

    # 3) batch large enough to trigger the >=2-tile split for v7x megacore
    batch3 = 512
    z3 = jax.random.normal(jax.random.fold_in(kz, 2), (batch3, z_dim), jnp.float32)
    y3 = jax.random.normal(jax.random.fold_in(ky, 2), (batch3, y_dim), jnp.float32)
    out3 = jax.block_until_ready(decoder_forward(z3, y3, params))
    ref3 = reference_forward(z3, y3, params)
    assert out3.shape == (batch3, x_dim)
    assert jnp.allclose(out3, ref3, atol=1e-5, rtol=1e-5)

    print("KERNEL_OK")
</pallas_src>

<mosaic_0001>
module attributes {stable_mosaic.version = 11 : i64} {
  func.func @decoder_kernel(%arg0: i32, %arg1: memref<8x16xf32, #tpu.memory_space<vmem>>, %arg2: memref<8x2xf32, #tpu.memory_space<vmem>>, %arg3: memref<16x32xf32, #tpu.memory_space<vmem>>, %arg4: memref<2x32xf32, #tpu.memory_space<vmem>>, %arg5: memref<1x32xf32, #tpu.memory_space<vmem>>, %arg6: memref<32x32xf32, #tpu.memory_space<vmem>>, %arg7: memref<1x32xf32, #tpu.memory_space<vmem>>, %arg8: memref<32x64xf32, #tpu.memory_space<vmem>>, %arg9: memref<1x64xf32, #tpu.memory_space<vmem>>, %arg10: memref<8x64xf32, #tpu.memory_space<vmem>>) attributes {dimension_semantics = [#tpu.dimension_semantics<parallel>], iteration_bounds = array<i64: 1>, scalar_prefetch = 0 : i64, scratch_operands = 0 : i64, tpu.core_type = #tpu.core_type<tc>, window_params = [{transform_indices = @transform_0, window_bounds = array<i64: 8, 16>}, {transform_indices = @transform_1, window_bounds = array<i64: 8, 2>}, {pipeline_mode = #tpu.pipeline_mode<synchronous>, transform_indices = @transform_2, window_bounds = array<i64: 16, 32>}, {pipeline_mode = #tpu.pipeline_mode<synchronous>, transform_indices = @transform_3, window_bounds = array<i64: 2, 32>}, {pipeline_mode = #tpu.pipeline_mode<synchronous>, transform_indices = @transform_4, window_bounds = array<i64: 1, 32>}, {pipeline_mode = #tpu.pipeline_mode<synchronous>, transform_indices = @transform_5, window_bounds = array<i64: 32, 32>}, {pipeline_mode = #tpu.pipeline_mode<synchronous>, transform_indices = @transform_6, window_bounds = array<i64: 1, 32>}, {pipeline_mode = #tpu.pipeline_mode<synchronous>, transform_indices = @transform_7, window_bounds = array<i64: 32, 64>}, {pipeline_mode = #tpu.pipeline_mode<synchronous>, transform_indices = @transform_8, window_bounds = array<i64: 1, 64>}, {transform_indices = @transform_9, window_bounds = array<i64: 8, 64>}]} {
    %c0 = arith.constant 0 : index
    %c0_0 = arith.constant 0 : index
    %0 = vector.load %arg1[%c0, %c0_0] : memref<8x16xf32, #tpu.memory_space<vmem>>, vector<8x16xf32>
    %c0_1 = arith.constant 0 : index
    %c0_2 = arith.constant 0 : index
    %1 = vector.load %arg3[%c0_1, %c0_2] : memref<16x32xf32, #tpu.memory_space<vmem>>, vector<16x32xf32>
    %cst = arith.constant dense<0.000000e+00> : vector<8x32xf32>
    %2 = tpu.matmul %0, %1, %cst {dimension_numbers = #tpu.dot_dimension_numbers<[1], [0], [0], [1], [0, 0, 1, 1], [], []>} : vector<8x16xf32>, vector<16x32xf32>, vector<8x32xf32> -> vector<8x32xf32>
    %c0_3 = arith.constant 0 : index
    %c0_4 = arith.constant 0 : index
    %3 = vector.load %arg2[%c0_3, %c0_4] : memref<8x2xf32, #tpu.memory_space<vmem>>, vector<8x2xf32>
    %c0_5 = arith.constant 0 : index
    %c0_6 = arith.constant 0 : index
    %4 = vector.load %arg4[%c0_5, %c0_6] : memref<2x32xf32, #tpu.memory_space<vmem>>, vector<2x32xf32>
    %5 = vector.extract_strided_slice %3 {offsets = [0, 0], sizes = [8, 1], strides = [1, 1]} : vector<8x2xf32> to vector<8x1xf32>
    %6 = vector.extract_strided_slice %4 {offsets = [0, 0], sizes = [1, 32], strides = [1, 1]} : vector<2x32xf32> to vector<1x32xf32>
    %7 = vector.broadcast %5 : vector<8x1xf32> to vector<8x32xf32>
    %8 = vector.broadcast %6 : vector<1x32xf32> to vector<8x32xf32>
    %9 = arith.mulf %7, %8 : vector<8x32xf32>
    %10 = arith.addf %2, %9 : vector<8x32xf32>
    %11 = vector.extract_strided_slice %3 {offsets = [0, 1], sizes = [8, 1], strides = [1, 1]} : vector<8x2xf32> to vector<8x1xf32>
    %12 = vector.extract_strided_slice %4 {offsets = [1, 0], sizes = [1, 32], strides = [1, 1]} : vector<2x32xf32> to vector<1x32xf32>
    %13 = vector.broadcast %11 : vector<8x1xf32> to vector<8x32xf32>
    %14 = vector.broadcast %12 : vector<1x32xf32> to vector<8x32xf32>
    %15 = arith.mulf %13, %14 : vector<8x32xf32>
    %16 = arith.addf %10, %15 : vector<8x32xf32>
    %c0_7 = arith.constant 0 : index
    %c0_8 = arith.constant 0 : index
    %17 = vector.load %arg5[%c0_7, %c0_8] : memref<1x32xf32, #tpu.memory_space<vmem>>, vector<1x32xf32>
    %18 = vector.broadcast %17 : vector<1x32xf32> to vector<8x32xf32>
    %19 = arith.addf %16, %18 : vector<8x32xf32>
    %cst_9 = arith.constant 0.000000e+00 : f32
    %20 = vector.broadcast %cst_9 : f32 to vector<8x32xf32>
    %21 = arith.cmpf ogt, %19, %20 : vector<8x32xf32>
    %cst_10 = arith.constant 9.99999974E-5 : f32
    %22 = vector.broadcast %cst_10 : f32 to vector<8x32xf32>
    %23 = arith.mulf %22, %19 : vector<8x32xf32>
    %24 = arith.select %21, %19, %23 : vector<8x32xi1>, vector<8x32xf32>
    %c0_11 = arith.constant 0 : index
    %c0_12 = arith.constant 0 : index
    %25 = vector.load %arg6[%c0_11, %c0_12] : memref<32x32xf32, #tpu.memory_space<vmem>>, vector<32x32xf32>
    %cst_13 = arith.constant dense<0.000000e+00> : vector<8x32xf32>
    %26 = tpu.matmul %24, %25, %cst_13 {dimension_numbers = #tpu.dot_dimension_numbers<[1], [0], [0], [1], [0, 0, 1, 1], [], []>} : vector<8x32xf32>, vector<32x32xf32>, vector<8x32xf32> -> vector<8x32xf32>
    %c0_14 = arith.constant 0 : index
    %c0_15 = arith.constant 0 : index
    %27 = vector.load %arg7[%c0_14, %c0_15] : memref<1x32xf32, #tpu.memory_space<vmem>>, vector<1x32xf32>
    %28 = vector.broadcast %27 : vector<1x32xf32> to vector<8x32xf32>
    %29 = arith.addf %26, %28 : vector<8x32xf32>
    %cst_16 = arith.constant 0.000000e+00 : f32
    %30 = vector.broadcast %cst_16 : f32 to vector<8x32xf32>
    %31 = arith.cmpf ogt, %29, %30 : vector<8x32xf32>
    %cst_17 = arith.constant 9.99999974E-5 : f32
    %32 = vector.broadcast %cst_17 : f32 to vector<8x32xf32>
    %33 = arith.mulf %32, %29 : vector<8x32xf32>
    %34 = arith.select %31, %29, %33 : vector<8x32xi1>, vector<8x32xf32>
    %c0_18 = arith.constant 0 : index
    %c0_19 = arith.constant 0 : index
    %35 = vector.load %arg8[%c0_18, %c0_19] : memref<32x64xf32, #tpu.memory_space<vmem>>, vector<32x64xf32>
    %cst_20 = arith.constant dense<0.000000e+00> : vector<8x64xf32>
    %36 = tpu.matmul %34, %35, %cst_20 {dimension_numbers = #tpu.dot_dimension_numbers<[1], [0], [0], [1], [0, 0, 1, 1], [], []>} : vector<8x32xf32>, vector<32x64xf32>, vector<8x64xf32> -> vector<8x64xf32>
    %c0_21 = arith.constant 0 : index
    %c0_22 = arith.constant 0 : index
    %37 = vector.load %arg9[%c0_21, %c0_22] : memref<1x64xf32, #tpu.memory_space<vmem>>, vector<1x64xf32>
    %38 = vector.broadcast %37 : vector<1x64xf32> to vector<8x64xf32>
    %39 = arith.addf %36, %38 : vector<8x64xf32>
    %cst_23 = arith.constant 5.000000e-01 : f32
    %40 = vector.broadcast %cst_23 : f32 to vector<8x64xf32>
    %41 = arith.mulf %40, %39 : vector<8x64xf32>
    %42 = math.tanh %41 : vector<8x64xf32>
    %cst_24 = arith.constant 5.000000e-01 : f32
    %43 = vector.broadcast %cst_24 : f32 to vector<8x64xf32>
    %44 = arith.mulf %43, %42 : vector<8x64xf32>
    %cst_25 = arith.constant 5.000000e-01 : f32
    %45 = vector.broadcast %cst_25 : f32 to vector<8x64xf32>
    %46 = arith.addf %44, %45 : vector<8x64xf32>
    %c0_26 = arith.constant 0 : index
    %c0_27 = arith.constant 0 : index
    %47 = vector.load %arg10[%c0_26, %c0_27] : memref<8x64xf32, #tpu.memory_space<vmem>>, vector<8x64xf32>
    tpu.vector_store %arg10[%c0_26, %c0_27], %46 {strides = array<i32>} : memref<8x64xf32, #tpu.memory_space<vmem>>, vector<8x64xf32>,
    return
  }
  func.func @transform_0(%arg0: i32) -> (i32, i32) {
    %c0_i32 = arith.constant 0 : i32
    %c0_i32_0 = arith.constant 0 : i32
    return %arg0, %c0_i32 : i32, i32
  }
  func.func @transform_1(%arg0: i32) -> (i32, i32) {
    %c0_i32 = arith.constant 0 : i32
    %c0_i32_0 = arith.constant 0 : i32
    return %arg0, %c0_i32 : i32, i32
  }
  func.func @transform_2(%arg0: i32) -> (i32, i32) {
    %c0_i32 = arith.constant 0 : i32
    %c0_i32_0 = arith.constant 0 : i32
    %c0_i32_1 = arith.constant 0 : i32
    return %c0_i32, %c0_i32_0 : i32, i32
  }
  func.func @transform_3(%arg0: i32) -> (i32, i32) {
    %c0_i32 = arith.constant 0 : i32
    %c0_i32_0 = arith.constant 0 : i32
    %c0_i32_1 = arith.constant 0 : i32
    return %c0_i32, %c0_i32_0 : i32, i32
  }
  func.func @transform_4(%arg0: i32) -> (i32, i32) {
    %c0_i32 = arith.constant 0 : i32
    %c0_i32_0 = arith.constant 0 : i32
    %c0_i32_1 = arith.constant 0 : i32
    return %c0_i32, %c0_i32_0 : i32, i32
  }
  func.func @transform_5(%arg0: i32) -> (i32, i32) {
    %c0_i32 = arith.constant 0 : i32
    %c0_i32_0 = arith.constant 0 : i32
    %c0_i32_1 = arith.constant 0 : i32
    return %c0_i32, %c0_i32_0 : i32, i32
  }
  func.func @transform_6(%arg0: i32) -> (i32, i32) {
    %c0_i32 = arith.constant 0 : i32
    %c0_i32_0 = arith.constant 0 : i32
    %c0_i32_1 = arith.constant 0 : i32
    return %c0_i32, %c0_i32_0 : i32, i32
  }
  func.func @transform_7(%arg0: i32) -> (i32, i32) {
    %c0_i32 = arith.constant 0 : i32
    %c0_i32_0 = arith.constant 0 : i32
    %c0_i32_1 = arith.constant 0 : i32
    return %c0_i32, %c0_i32_0 : i32, i32
  }
  func.func @transform_8(%arg0: i32) -> (i32, i32) {
    %c0_i32 = arith.constant 0 : i32
    %c0_i32_0 = arith.constant 0 : i32
    %c0_i32_1 = arith.constant 0 : i32
    return %c0_i32, %c0_i32_0 : i32, i32
  }
  func.func @transform_9(%arg0: i32) -> (i32, i32) {
    %c0_i32 = arith.constant 0 : i32
    %c0_i32_0 = arith.constant 0 : i32
    return %arg0, %c0_i32 : i32, i32
  }
}

</mosaic_0001>

<llo_original>
// kernel: tpu_custom_call.1
$region0: #{tpu_custom_call.1}
  #allocation0 [shape = 'u32[]', space=smem, size = 0x4, offset = 0x4, fixed_abs, tag = 'smem constant byte address 0x4 - core index']
  #allocation1 [shape = 'u32[144,128]{1,0:T(1,128)}', space=vmem, size = 0x12000, scoped, tag = 'internal scratch']
  %s0 = inlined_call_operand.hbm [shape: f32[8,16], index: 0, kind: input, shape index: {}]
  %s1 = inlined_call_operand.vmem [shape: f32[8,2], index: 1, kind: input, shape index: {}]
  %s2 = inlined_call_operand.hbm [shape: f32[16,32], index: 2, kind: input, shape index: {}]
  %s3 = inlined_call_operand.vmem [shape: f32[2,32], index: 3, kind: input, shape index: {}]
  %s4 = inlined_call_operand.vmem [shape: f32[1,32], index: 4, kind: input, shape index: {}]
  %s5 = inlined_call_operand.hbm [shape: f32[32,32], index: 5, kind: input, shape index: {}]
  %s6 = inlined_call_operand.vmem [shape: f32[1,32], index: 6, kind: input, shape index: {}]
  %s7 = inlined_call_operand.vmem [shape: f32[32,64], index: 7, kind: input, shape index: {}]
  %s8 = inlined_call_operand.vmem [shape: f32[1,64], index: 8, kind: input, shape index: {}]
  %s9 = inlined_call_operand.hbm [shape: f32[8,64], index: 9, kind: output, shape index: {}]
  %s10 = sld [smem:[#allocation0]]
  $region58: #{tpu_custom_call.1} parent=0
    _
  %s12 = ssub.s32 1, %s10
  %s13 = scalar_select 0, %s12, %s10
  $region1: #{tpu_custom_call.1} parent=0
    #allocation2 [shape = 'u8[4096]{0}', space=vmem, size = 0x1000, scoped, tag = 'input window, operand 0, single buffered']
    #allocation3 [shape = 's32[1]{0}', space=sflag, size = 0x4, scoped, tag = 'scoped memory for tpu_custom_call.1']
    #allocation4 [shape = 's32[1]{0}', space=sflag, size = 0x4, scoped, tag = 'scoped memory for tpu_custom_call.1']
    #allocation5 [shape = 'u8[8192]{0}', space=vmem, size = 0x2000, scoped, tag = 'input window, operand 2, single buffered']
    #allocation6 [shape = 's32[1]{0}', space=sflag, size = 0x4, scoped, tag = 'scoped memory for tpu_custom_call.1']
    #allocation7 [shape = 'u8[16384]{0}', space=vmem, size = 0x4000, scoped, tag = 'input window, operand 5, single buffered']
    #allocation8 [shape = 'u8[4096]{0}', space=vmem, size = 0x1000, scoped, tag = 'output window, operand 0, single buffered']
    %14 = vsyncpa [#allocation3], 0
    %15 = vsyncpa [#allocation6], 0
    %16 = vsyncpa [#allocation4], 0
    // Predicated region
    $region2: #{tpu_custom_call.1} parent=1 // pred_check
      _
    $region3: #{tpu_custom_call.1} parent=1 // pred_check_branch
      %18 = sbr.rel (0) target = $region5
    $region4: #{tpu_custom_call.1} parent=1 // pred_region
      %s20 = ssub.s32 128, 128
      %21 = vsyncadd [#allocation3], %s20
      %s23 = sshll.u32 [#allocation2], 4
      %s24 = int_to_ptr.vmem [resolvable:$true] %s23
      %26 = dma.hbm_to_vmem [thread:$0]  %s0, 128, %s24, [#allocation3]
    $region5: #{tpu_custom_call.1} parent=1 // pred_fallthru
      _
    // Predicated region
    $region6: #{tpu_custom_call.1} parent=1 // pred_check
      _
    $region7: #{tpu_custom_call.1} parent=1 // pred_check_branch
      %28 = sbr.rel (0) target = $region9
    $region8: #{tpu_custom_call.1} parent=1 // pred_region
      _
    $region9: #{tpu_custom_call.1} parent=1 // pred_fallthru
      _
    // Predicated region
    $region10: #{tpu_custom_call.1} parent=1 // pred_check
      _
    $region11: #{tpu_custom_call.1} parent=1 // pred_check_branch
      %30 = sbr.rel (0) target = $region13
    $region12: #{tpu_custom_call.1} parent=1 // pred_region
      %s32 = ssub.s32 256, 256
      %33 = vsyncadd [#allocation6], %s32
      %s34 = sshll.u32 [#allocation5], 4
      %s35 = int_to_ptr.vmem [resolvable:$true] %s34
      %40 = dma.hbm_to_vmem [thread:$0]  %s2, 256, %s35, [#allocation6], 128, 128, 8
    $region13: #{tpu_custom_call.1} parent=1 // pred_fallthru
      _
    // Predicated region
    $region14: #{tpu_custom_call.1} parent=1 // pred_check
      _
    $region15: #{tpu_custom_call.1} parent=1 // pred_check_branch
      %42 = sbr.rel (0) target = $region17
    $region16: #{tpu_custom_call.1} parent=1 // pred_region
      _
    $region17: #{tpu_custom_call.1} parent=1 // pred_fallthru
      _
    // Predicated region
    $region18: #{tpu_custom_call.1} parent=1 // pred_check
      _
    $region19: #{tpu_custom_call.1} parent=1 // pred_check_branch
      %44 = sbr.rel (0) target = $region21
    $region20: #{tpu_custom_call.1} parent=1 // pred_region
      _
    $region21: #{tpu_custom_call.1} parent=1 // pred_fallthru
      _
    // Predicated region
    $region22: #{tpu_custom_call.1} parent=1 // pred_check
      _
    $region23: #{tpu_custom_call.1} parent=1 // pred_check_branch
      %46 = sbr.rel (0) target = $region25
    $region24: #{tpu_custom_call.1} parent=1 // pred_region
      %s48 = ssub.s32 512, 512
      %49 = vsyncadd [#allocation6], %s48
      %s50 = sshll.u32 [#allocation7], 4
      %s51 = int_to_ptr.vmem [resolvable:$true] %s50
      %56 = dma.hbm_to_vmem [thread:$0]  %s5, 512, %s51, [#allocation6], 128, 128, 8
    $region25: #{tpu_custom_call.1} parent=1 // pred_fallthru
      _
    // Predicated region
    $region26: #{tpu_custom_call.1} parent=1 // pred_check
      _
    $region27: #{tpu_custom_call.1} parent=1 // pred_check_branch
      %58 = sbr.rel (0) target = $region29
    $region28: #{tpu_custom_call.1} parent=1 // pred_region
      _
    $region29: #{tpu_custom_call.1} parent=1 // pred_fallthru
      _
    // Predicated region
    $region30: #{tpu_custom_call.1} parent=1 // pred_check
      _
    $region31: #{tpu_custom_call.1} parent=1 // pred_check_branch
      %60 = sbr.rel (0) target = $region33
    $region32: #{tpu_custom_call.1} parent=1 // pred_region
      _
    $region33: #{tpu_custom_call.1} parent=1 // pred_fallthru
      _
    // Predicated region
    $region34: #{tpu_custom_call.1} parent=1 // pred_check
      _
    $region35: #{tpu_custom_call.1} parent=1 // pred_check_branch
      %62 = sbr.rel (0) target = $region37
    $region36: #{tpu_custom_call.1} parent=1 // pred_region
      _
    $region37: #{tpu_custom_call.1} parent=1 // pred_fallthru
      _
    // Predicated region
    $region38: #{tpu_custom_call.1} parent=1 // pred_check
      _
    $region39: #{tpu_custom_call.1} parent=1 // pred_check_branch
      %64 = sbr.rel (0) target = $region41
    $region40: #{tpu_custom_call.1} parent=1 // pred_region
      %65 = dma.done [#allocation3], 128
    $region41: #{tpu_custom_call.1} parent=1 // pred_fallthru
      _
    // Predicated region
    $region42: #{tpu_custom_call.1} parent=1 // pred_check
      _
    $region43: #{tpu_custom_call.1} parent=1 // pred_check_branch
      %67 = sbr.rel (0) target = $region45
    $region44: #{tpu_custom_call.1} parent=1 // pred_region
      %68 = dma.done [#allocation6], 256
    $region45: #{tpu_custom_call.1} parent=1 // pred_fallthru
      _
    // Predicated region
    $region46: #{tpu_custom_call.1} parent=1 // pred_check
      _
    $region47: #{tpu_custom_call.1} parent=1 // pred_check_branch
      %70 = sbr.rel (0) target = $region49
    $region48: #{tpu_custom_call.1} parent=1 // pred_region
      %71 = dma.done [#allocation6], 512
    $region49: #{tpu_custom_call.1} parent=1 // pred_fallthru
      _
    %v72 = vld [vmem:[#allocation2] sm:$0xff]
    %v73 = vld [vmem:[#allocation5] sm:$0xff]
    %v74 = vld [vmem:[#allocation5 + $0x8] sm:$0xff]
    %v75 = vld [vmem:[%s1] sm:$0xff]
    %v76 = vld [vmem:[%s3] sm:$0x3]
    %78 = vset.pattern.permute.xlu0 0
    %79 = vperm.xlu0 %78, %v75
    %v80 = vpop.permute.xlu0 %79
    %v82 = vlaneseq
    %v83 = vshrl.u32 %v82, 7
    %v84 = vsub.s32 0, %v83
    %v85 = vrot.slane %v76, %v84
    %v86 = vmul.f32 %v80, %v85
    %vm87 = vcmask 130048
    %v89 = vsel %vm87, %v72, 0
    %91 = vmatprep.subr.mxu0 0.0
    %92 = vmatpush1.msra.mxu0 %v73
    %93 = vmatprep.subr.mxu0 0.0
    %94 = vmatpush1.msra.mxu0 %v74
    %95 = vmatprep.subr.mxu0 0.0
    %96 = vmatpush1.msra.mxu0 0.0
    %97 = vmatprep.subr.mxu0 0.0
    %98 = vmatpush1.msra.mxu0 0.0
    %99 = vmatprep.subr.mxu0 0.0
    %100 = vmatpush1.msra.mxu0 0.0
    %101 = vmatprep.subr.mxu0 0.0
    %102 = vmatpush1.msra.mxu0 0.0
    %103 = vmatprep.subr.mxu0 0.0
    %104 = vmatpush1.msra.mxu0 0.0
    %105 = vmatprep.subr.mxu0 0.0
    %106 = vmatpush1.msra.mxu0 0.0
    %107 = vmatprep.subr.mxu0 0.0
    %108 = vmatpush1.msra.mxu0 0.0
    %109 = vmatprep.subr.mxu0 0.0
    %110 = vmatpush1.msra.mxu0 0.0
    %111 = vmatprep.subr.mxu0 0.0
    %112 = vmatpush1.msra.mxu0 0.0
    %113 = vmatprep.subr.mxu0 0.0
    %114 = vmatpush1.msra.mxu0 0.0
    %115 = vmatprep.subr.mxu0 0.0
    %116 = vmatpush1.msra.mxu0 0.0
    %117 = vmatprep.subr.mxu0 0.0
    %118 = vmatpush1.msra.mxu0 0.0
    %119 = vmatprep.subr.mxu0 0.0
    %120 = vmatpush1.msra.mxu0 0.0
    %121 = vmatprep.subr.mxu0 0.0
    %122 = vmatpush1.msra.mxu0 0.0
    %123 = vmatprep.subr.mxu0 0.0
    %124 = vmatpush1.msra.mxu0 0.0
    %125 = vmatprep.subr.mxu0 0.0
    %126 = vmatpush1.msra.mxu0 0.0
    %127 = vmatprep.subr.mxu0 0.0
    %128 = vmatpush1.msra.mxu0 0.0
    %129 = vmatprep.subr.mxu0 0.0
    %130 = vmatpush1.msra.mxu0 0.0
    %131 = vmatprep.subr.mxu0 0.0
    %132 = vmatpush1.msra.mxu0 0.0
    %133 = vmatprep.subr.mxu0 0.0
    %134 = vmatpush1.msra.mxu0 0.0
    %135 = vmatprep.subr.mxu0 0.0
    %136 = vmatpush1.msra.mxu0 0.0
    %137 = vmatprep.subr.mxu0 0.0
    %138 = vmatpush1.msra.mxu0 0.0
    %139 = vmatprep.subr.mxu0 0.0
    %140 = vmatpush1.msra.mxu0 0.0
    %141 = vmatprep.subr.mxu0 0.0
    %142 = vmatpush1.msra.mxu0 0.0
    %143 = vmatprep.subr.mxu0 0.0
    %144 = vmatpush1.msra.mxu0 0.0
    %145 = vmatprep.subr.mxu0 0.0
    %146 = vmatpush1.msra.mxu0 0.0
    %147 = vmatprep.subr.mxu0 0.0
    %148 = vmatpush1.msra.mxu0 0.0
    %149 = vmatprep.subr.mxu0 0.0
    %150 = vmatpush1.msra.mxu0 0.0
    %151 = vmatprep.subr.mxu0 0.0
    %152 = vmatpush1.msra.mxu0 0.0
    %153 = vmatprep.subr.mxu0 0.0
    %154 = vmatpush1.msra.mxu0 0.0
    %155 = vmatprep.mubr.f32.mxu0 0.0
    %156 = vmatmul.mubr.f32.gmra.mrb[0].mxu0 %v89
    %v157 = vpop.f32.mrb[0].mxu0
    %v158 = vadd.f32 %v86, %v157
    %v159 = vpop.f32.mrb[0].mxu0
    %160 = vdwg.mxu0
    %161 = vset.pattern.permute.xlu0 1
    %162 = vperm.xlu0 %161, %v75
    %v163 = vpop.permute.xlu0 %162
    %v165 = vlaneseq
    %v166 = vshrl.u32 %v165, 7
    %v167 = vsub.s32 1, %v166
    %v168 = vrot.slane %v76, %v167
    %v169 = vmul.f32 %v163, %v168
    %v170 = vadd.f32 %v158, %v169
    %v171 = vld [vmem:[%s4] sm:$0x1]
    %v173 = vlaneseq
    %v174 = vshrl.u32 %v173, 7
    %v175 = vsub.s32 0, %v174
    %v176 = vrot.slane %v171, %v175
    %v178 = vadd.f32 %v170, %v176
    %vm179 = vcmp.gt.f32.partialorder %v178, 0.0
    %v180 = vmul.f32 %v178, 0.0001
    %v181 = vsel %vm179, %v178, %v180
    %v182 = vld [vmem:[#allocation7] sm:$0xff]
    %v183 = vld [vmem:[#allocation7 + $0x8] sm:$0xff]
    %v184 = vld [vmem:[#allocation7 + $0x10] sm:$0xff]
    %v185 = vld [vmem:[#allocation7 + $0x18] sm:$0xff]
    %v186 = vld [vmem:[%s6] sm:$0x1]
    %v188 = vlaneseq
    %v189 = vshrl.u32 %v188, 7
    %v190 = vsub.s32 0, %v189
    %v191 = vrot.slane %v186, %v190
    %vm193 = vcmask 261120
    %v195 = vsel %vm193, %v181, 0
    %197 = vmatprep.subr.mxu0 0.0
    %198 = vmatpush1.msra.mxu0 %v182
    %199 = vmatprep.subr.mxu0 0.0
    %200 = vmatpush1.msra.mxu0 %v183
    %201 = vmatprep.subr.mxu0 0.0
    %202 = vmatpush1.msra.mxu0 %v184
    %203 = vmatprep.subr.mxu0 0.0
    %204 = vmatpush1.msra.mxu0 %v185
    %205 = vmatprep.subr.mxu0 0.0
    %206 = vmatpush1.msra.mxu0 0.0
    %207 = vmatprep.subr.mxu0 0.0
    %208 = vmatpush1.msra.mxu0 0.0
    %209 = vmatprep.subr.mxu0 0.0
    %210 = vmatpush1.msra.mxu0 0.0
    %211 = vmatprep.subr.mxu0 0.0
    %212 = vmatpush1.msra.mxu0 0.0
    %213 = vmatprep.subr.mxu0 0.0
    %214 = vmatpush1.msra.mxu0 0.0
    %215 = vmatprep.subr.mxu0 0.0
    %216 = vmatpush1.msra.mxu0 0.0
    %217 = vmatprep.subr.mxu0 0.0
    %218 = vmatpush1.msra.mxu0 0.0
    %219 = vmatprep.subr.mxu0 0.0
    %220 = vmatpush1.msra.mxu0 0.0
    %221 = vmatprep.subr.mxu0 0.0
    %222 = vmatpush1.msra.mxu0 0.0
    %223 = vmatprep.subr.mxu0 0.0
    %224 = vmatpush1.msra.mxu0 0.0
    %225 = vmatprep.subr.mxu0 0.0
    %226 = vmatpush1.msra.mxu0 0.0
    %227 = vmatprep.subr.mxu0 0.0
    %228 = vmatpush1.msra.mxu0 0.0
    %229 = vmatprep.subr.mxu0 0.0
    %230 = vmatpush1.msra.mxu0 0.0
    %231 = vmatprep.subr.mxu0 0.0
    %232 = vmatpush1.msra.mxu0 0.0
    %233 = vmatprep.subr.mxu0 0.0
    %234 = vmatpush1.msra.mxu0 0.0
    %235 = vmatprep.subr.mxu0 0.0
    %236 = vmatpush1.msra.mxu0 0.0
    %237 = vmatprep.subr.mxu0 0.0
    %238 = vmatpush1.msra.mxu0 0.0
    %239 = vmatprep.subr.mxu0 0.0
    %240 = vmatpush1.msra.mxu0 0.0
    %241 = vmatprep.subr.mxu0 0.0
    %242 = vmatpush1.msra.mxu0 0.0
    %243 = vmatprep.subr.mxu0 0.0
    %244 = vmatpush1.msra.mxu0 0.0
    %245 = vmatprep.subr.mxu0 0.0
    %246 = vmatpush1.msra.mxu0 0.0
    %247 = vmatprep.subr.mxu0 0.0
    %248 = vmatpush1.msra.mxu0 0.0
    %249 = vmatprep.subr.mxu0 0.0
    %250 = vmatpush1.msra.mxu0 0.0
    %251 = vmatprep.subr.mxu0 0.0
    %252 = vmatpush1.msra.mxu0 0.0
    %253 = vmatprep.subr.mxu0 0.0
    %254 = vmatpush1.msra.mxu0 0.0
    %255 = vmatprep.subr.mxu0 0.0
    %256 = vmatpush1.msra.mxu0 0.0
    %257 = vmatprep.subr.mxu0 0.0
    %258 = vmatpush1.msra.mxu0 0.0
    %259 = vmatprep.subr.mxu0 0.0
    %260 = vmatpush1.msra.mxu0 0.0
    %261 = vmatprep.mubr.f32.mxu0 0.0
    %262 = vmatmul.mubr.f32.gmra.mrb[0].mxu0 %v195
    %v263 = vpop.f32.mrb[0].mxu0
    %v264 = vadd.f32 %v191, %v263
    %v265 = vpop.f32.mrb[0].mxu0
    %266 = vdwg.mxu0
    %vm267 = vcmp.gt.f32.partialorder %v264, 0.0
    %v268 = vmul.f32 %v264, 0.0001
    %v269 = vsel %vm267, %v264, %v268
    %v270 = vld [vmem:[%s7] sm:$0xff]
    %v271 = vld [vmem:[%s7 + $0x8] sm:$0xff]
    %v272 = vld [vmem:[%s7 + $0x10] sm:$0xff]
    %v273 = vld [vmem:[%s7 + $0x18] sm:$0xff]
    %v274 = vld [vmem:[%s8] sm:$0x1]
    %v276 = vlaneseq
    %v277 = vshrl.u32 %v276, 7
    %v278 = vsub.s32 0, %v277
    %v279 = vrot.slane %v274, %v278
    %v282 = vsel %vm193, %v269, 0
    %284 = vmatprep.subr.mxu0 0.0
    %285 = vmatpush1.msra.mxu0 %v270
    %286 = vmatprep.subr.mxu0 0.0
    %287 = vmatpush1.msra.mxu0 %v271
    %288 = vmatprep.subr.mxu0 0.0
    %289 = vmatpush1.msra.mxu0 %v272
    %290 = vmatprep.subr.mxu0 0.0
    %291 = vmatpush1.msra.mxu0 %v273
    %292 = vmatprep.subr.mxu0 0.0
    %293 = vmatpush1.msra.mxu0 0.0
    %294 = vmatprep.subr.mxu0 0.0
    %295 = vmatpush1.msra.mxu0 0.0
    %296 = vmatprep.subr.mxu0 0.0
    %297 = vmatpush1.msra.mxu0 0.0
    %298 = vmatprep.subr.mxu0 0.0
    %299 = vmatpush1.msra.mxu0 0.0
    %300 = vmatprep.subr.mxu0 0.0
    %301 = vmatpush1.msra.mxu0 0.0
    %302 = vmatprep.subr.mxu0 0.0
    %303 = vmatpush1.msra.mxu0 0.0
    %304 = vmatprep.subr.mxu0 0.0
    %305 = vmatpush1.msra.mxu0 0.0
    %306 = vmatprep.subr.mxu0 0.0
    %307 = vmatpush1.msra.mxu0 0.0
    %308 = vmatprep.subr.mxu0 0.0
    %309 = vmatpush1.msra.mxu0 0.0
    %310 = vmatprep.subr.mxu0 0.0
    %311 = vmatpush1.msra.mxu0 0.0
    %312 = vmatprep.subr.mxu0 0.0
    %313 = vmatpush1.msra.mxu0 0.0
    %314 = vmatprep.subr.mxu0 0.0
    %315 = vmatpush1.msra.mxu0 0.0
    %316 = vmatprep.subr.mxu0 0.0
    %317 = vmatpush1.msra.mxu0 0.0
    %318 = vmatprep.subr.mxu0 0.0
    %319 = vmatpush1.msra.mxu0 0.0
    %320 = vmatprep.subr.mxu0 0.0
    %321 = vmatpush1.msra.mxu0 0.0
    %322 = vmatprep.subr.mxu0 0.0
    %323 = vmatpush1.msra.mxu0 0.0
    %324 = vmatprep.subr.mxu0 0.0
    %325 = vmatpush1.msra.mxu0 0.0
    %326 = vmatprep.subr.mxu0 0.0
    %327 = vmatpush1.msra.mxu0 0.0
    %328 = vmatprep.subr.mxu0 0.0
    %329 = vmatpush1.msra.mxu0 0.0
    %330 = vmatprep.subr.mxu0 0.0
    %331 = vmatpush1.msra.mxu0 0.0
    %332 = vmatprep.subr.mxu0 0.0
    %333 = vmatpush1.msra.mxu0 0.0
    %334 = vmatprep.subr.mxu0 0.0
    %335 = vmatpush1.msra.mxu0 0.0
    %336 = vmatprep.subr.mxu0 0.0
    %337 = vmatpush1.msra.mxu0 0.0
    %338 = vmatprep.subr.mxu0 0.0
    %339 = vmatpush1.msra.mxu0 0.0
    %340 = vmatprep.subr.mxu0 0.0
    %341 = vmatpush1.msra.mxu0 0.0
    %342 = vmatprep.subr.mxu0 0.0
    %343 = vmatpush1.msra.mxu0 0.0
    %344 = vmatprep.subr.mxu0 0.0
    %345 = vmatpush1.msra.mxu0 0.0
    %346 = vmatprep.subr.mxu0 0.0
    %347 = vmatpush1.msra.mxu0 0.0
    %348 = vmatprep.mubr.f32.mxu0 0.0
    %349 = vmatmul.mubr.f32.gmra.mrb[0].mxu0 %v282
    %v350 = vpop.f32.mrb[0].mxu0
    %v351 = vadd.f32 %v279, %v350
    %v352 = vpop.f32.mrb[0].mxu0
    %353 = vdwg.mxu0
    %v354 = vmul.f32 %v351, 0.5
    %v355 = vtanh.pop %v354
    %v356 = vmul.f32 %v355, 0.5
    %v357 = vadd.f32 %v356, 0.5
    %vm358 = vcmask 523264
    %359 = vst.msk [vmem:[#allocation8] sm:$0xff] %vm358, %v357
    // Predicated region
    $region50: #{tpu_custom_call.1} parent=1 // pred_check
      _
    $region51: #{tpu_custom_call.1} parent=1 // pred_check_branch
      %361 = sbr.rel (0) target = $region53
    $region52: #{tpu_custom_call.1} parent=1 // pred_region
      %s363 = ssub.s32 128, 128
      %364 = vsyncadd [#allocation4], %s363
      %s366 = sshll.u32 [#allocation8], 4
      %s367 = int_to_ptr.vmem [resolvable:$true] %s366
      %369 = dma.vmem_to_hbm [thread:$0]  %s367, 128, %s9, [#allocation4]
    $region53: #{tpu_custom_call.1} parent=1 // pred_fallthru
      _
    // Predicated region
    $region54: #{tpu_custom_call.1} parent=1 // pred_check
      _
    $region55: #{tpu_custom_call.1} parent=1 // pred_check_branch
      %371 = sbr.rel (0) target = $region57
    $region56: #{tpu_custom_call.1} parent=1 // pred_region
      %372 = dma.done [#allocation4], 128
    $region57: #{tpu_custom_call.1} parent=1 // pred_fallthru
      _
    %373 = vsyncpa [#allocation3], 1
    %374 = vsyncpa [#allocation6], 1
    %375 = vsyncpa [#allocation4], 1

</llo_original>
